<compile_context>
chip_gen: v5e
topology: v5e:2x2
jax: 0.10.0
libtpu: 0.0.40
codegen_flags: <defaults>
</compile_context>

<pallas_src>
import math

import jax
import jax.numpy as jnp
from jax.experimental import pallas as pl
from jax.experimental.pallas import tpu as pltpu

LANES = 128
MAX_TILE_ROWS = 2048     # (2048, 128) f32 = 1 MiB block; x2 inputs x2 buffers = 4 MiB
_SMOOTH = 1.0


def _round_up(a, b):
    return (a + b - 1) // b * b


def _sublane_multiple(dtype):
    """Minimum sublane tile for a dtype: 8 (32-bit), 16 (bf16/f16), 32 (int8/bool)."""
    return max(8, 32 // jnp.dtype(dtype).itemsize)


def _make_dice_kernel(tile_rows, num_inner, num_full_tiles, needs_mask, m_valid):
    """Per-sample partial sums of sigmoid(x)*y and sigmoid(x)+y, pre-reduced to (8,128)."""
    sub_blocks = tile_rows // 8

    def kernel(keep_ref, x_ref, y_ref, out_ref, acc_i, acc_pt):
        b = pl.program_id(0)   # sample index      (parallel)
        o = pl.program_id(1)   # outer tile index  (parallel, v7x megacore helper)
        i = pl.program_id(2)   # inner tile index  (arbitrary / accumulated)
        jlin = o * num_inner + i   # linear row-tile index

        @pl.when(i == 0)
        def _init():
            acc_i[...] = jnp.zeros_like(acc_i)
            acc_pt[...] = jnp.zeros_like(acc_pt)

        def accumulate(p, t):
            # Pre-reduce the block to one (8, 128) vreg before touching the
            # accumulators, so scratch traffic is per-block, not per-vreg.
            acc_i[...] += (p * t).reshape(sub_blocks, 8, LANES).sum(axis=0)
            acc_pt[...] += (p + t).reshape(sub_blocks, 8, LANES).sum(axis=0)

        def fast_tile():
            # Full tile: no masking work at all.
            p = jax.nn.sigmoid(x_ref[0].astype(jnp.float32))
            t = y_ref[0].astype(jnp.float32)
            accumulate(p, t)

        def ragged_tile():
            # Ragged / padded / phantom tile: element-index mask against the true
            # per-sample element count.  Use a select (NOT a 0/1 multiply) so NaN
            # bits in OOB / padded regions cannot poison the accumulators.
            ridx = jax.lax.broadcasted_iota(jnp.int32, (tile_rows, LANES), 0)
            lidx = jax.lax.broadcasted_iota(jnp.int32, (tile_rows, LANES), 1)
            elem = (jlin * tile_rows + ridx) * LANES + lidx
            valid = elem < m_valid
            p = jnp.where(valid, jax.nn.sigmoid(x_ref[0].astype(jnp.float32)), 0.0)
            t = jnp.where(valid, y_ref[0].astype(jnp.float32), 0.0)
            accumulate(p, t)

        # Per-sample keep gate (scalar prefetch, SMEM): masked samples skip all
        # compute and contribute exact zeros via the unconditional init/finalize.
        @pl.when(keep_ref[b] > 0)
        def _compute():
            if not needs_mask:
                fast_tile()
            else:
                if num_full_tiles > 0:
                    @pl.when(jlin < num_full_tiles)
                    def _():
                        fast_tile()

                @pl.when(jlin >= num_full_tiles)
                def _():
                    ragged_tile()

        @pl.when(i == num_inner - 1)
        def _finalize():
            out_ref[0, 0, 0] = acc_i[...]
            out_ref[0, 0, 1] = acc_pt[...]

    return kernel


def _lane_view(a, rows_padded):
    """(B, ...) -> (B, rows_padded, 128) lane-dense view.

    Free reshape for the common case prod(shape[1:]) % (128 * sublane_mult) == 0.
    """
    bsz = a.shape[0]
    m = math.prod(a.shape[1:])
    flat = a.reshape(bsz, m)
    pad = rows_padded * LANES - m
    if pad:
        # TODO(synk): this is a full-tensor HBM copy; for production shapes where
        # C*H*W isn't lane/sublane aligned, pad once upstream at allocation instead.
        flat = jnp.pad(flat, ((0, 0), (0, pad)))
    return flat.reshape(bsz, rows_padded, LANES)


def _dice_partial_sums(x, y, keep_per_sample):
    """Returns (sum(sigmoid(x)*y), sum(sigmoid(x)) + sum(y)) over kept samples."""
    bsz = x.shape[0]
    m = math.prod(x.shape[1:])
    rows = (m + LANES - 1) // LANES

    # dtype-aware sublane rounding (8 for f32, 16 for bf16, 32 for int8/bool).
    mult = max(_sublane_multiple(x.dtype), _sublane_multiple(y.dtype))
    rows_padded = _round_up(rows, mult)
    tile_rows = min(MAX_TILE_ROWS, rows_padded)
    num_tiles = (rows_padded + tile_rows - 1) // tile_rows

    # v7x megacore: batch is the primary parallel axis; if it can't feed two
    # TensorCores, split the row-tile axis into (outer parallel, inner arbitrary).
    num_outer = 2 if (bsz < 2 and num_tiles >= 2) else 1
    num_inner = (num_tiles + num_outer - 1) // num_outer

    m_per_tile = tile_rows * LANES
    num_full_tiles = m // m_per_tile                       # static
    needs_mask = (num_outer * num_inner * m_per_tile) != m  # static

    x3 = _lane_view(x, rows_padded)
    y3 = _lane_view(y, rows_padded)
    keep_i32 = keep_per_sample.astype(jnp.int32)

    kernel = _make_dice_kernel(tile_rows, num_inner, num_full_tiles, needs_mask, m)

    def in_map(b, o, i, keep):
        # Clamp phantom tiles (when num_tiles % num_outer != 0) onto the last real
        # block; their contribution is zeroed by the in-kernel element mask.
        return (b, jnp.minimum(o * num_inner + i, num_tiles - 1), 0)

    parts = pl.pallas_call(
        kernel,
        out_shape=jax.ShapeDtypeStruct((bsz, num_outer, 2, 8, LANES), jnp.float32),
        grid_spec=pltpu.PrefetchScalarGridSpec(
            num_scalar_prefetch=1,
            grid=(bsz, num_outer, num_inner),
            in_specs=[
                pl.BlockSpec((1, tile_rows, LANES), in_map),
                pl.BlockSpec((1, tile_rows, LANES), in_map),
            ],
            out_specs=pl.BlockSpec((1, 1, 2, 8, LANES),
                                   lambda b, o, i, keep: (b, o, 0, 0, 0)),
            scratch_shapes=[
                pltpu.VMEM((8, LANES), jnp.float32),
                pltpu.VMEM((8, LANES), jnp.float32),
            ],
        ),
        compiler_params=pltpu.CompilerParams(
            dimension_semantics=("parallel", "parallel", "arbitrary")),
    )(keep_i32, x3, y3)

    sums = jnp.sum(parts, axis=(0, 1, 3, 4))   # tiny final reduce in plain JAX
    return sums[0], sums[1]


def dice_loss(x, y, keep_per_sample=None, smooth=_SMOOTH):
    """Smooth dice loss with sigmoid activation (optionally per-sample masked)."""
    if keep_per_sample is None:
        keep_per_sample = jnp.ones((x.shape[0],), jnp.int32)
    inter, pt = _dice_partial_sums(x, y, keep_per_sample)
    return 1.0 - (2.0 * inter + smooth) / (pt + smooth)


def mint_ent_loss(x):
    # TODO(synk): reference implementation is a TODO stub returning 0.
    return jnp.float32(0.0)


class SegLoss:
    """JAX/Pallas port of the PyTorch SegLoss module (no learnable params)."""

    def __init__(self, mode='supervised', mint_ent_w=0.005):
        self.mode = mode
        self.mint_ent_w = mint_ent_w

    def __call__(self, x, y, content):
        if self.mode == 'unsupervised':
            # dice over source-content samples (content falsy), same truthiness
            # semantics as `.astype(bool)` in the reference.
            keep = jnp.logical_not(content.astype(bool)).astype(jnp.int32)
            dice = dice_loss(x, y, keep_per_sample=keep)
            mint_ent = mint_ent_loss(x)          # stub -> 0
            return dice + self.mint_ent_w * mint_ent
        return dice_loss(x, y)


def _ref_dice(x, y):
    p = jax.nn.sigmoid(x.astype(jnp.float32))
    yf = y.astype(jnp.float32)
    return 1.0 - (2.0 * jnp.sum(p * yf) + _SMOOTH) / (jnp.sum(p) + jnp.sum(yf) + _SMOOTH)


if __name__ == "__main__":
    key = jax.random.PRNGKey(0)
    kx, ky, k2, k3 = jax.random.split(key, 4)
    B, C, H, W = 2, 4, 16, 16
    x = jax.random.normal(kx, (B, C, H, W), dtype=jnp.float32)
    y = (jax.random.uniform(ky, (B, C, H, W)) > 0.5).astype(jnp.float32)
    content = jnp.array([0, 1], dtype=jnp.int32)

    # supervised branch (fast path, no mask code emitted)
    loss = jax.block_until_ready(SegLoss(mode='supervised')(x, y, content))
    ref = _ref_dice(x, y)
    assert abs(float(loss) - float(ref)) < 1e-4, (float(loss), float(ref))

    # unsupervised branch (dice over source samples only, mint-ent stub -> 0)
    loss_u = jax.block_until_ready(SegLoss(mode='unsupervised')(x, y, content))
    ref_u = _ref_dice(x[:1], y[:1])
    assert abs(float(loss_u) - float(ref_u)) < 1e-4, (float(loss_u), float(ref_u))

    # ragged shape (C*H*W not lane aligned) -> exercises the masked tile path
    xr = jax.random.normal(k2, (1, 3, 10, 10), dtype=jnp.float32)
    yr = (jax.random.uniform(k3, (1, 3, 10, 10)) > 0.5).astype(jnp.float32)
    loss_r = jax.block_until_ready(dice_loss(xr, yr))
    ref_r = _ref_dice(xr, yr)
    assert abs(float(loss_r) - float(ref_r)) < 1e-4, (float(loss_r), float(ref_r))

    # bf16 input -> exercises dtype-aware sublane rounding + in-kernel cast
    xb = x.astype(jnp.bfloat16)
    loss_b = jax.block_until_ready(dice_loss(xb, y))
    ref_b = _ref_dice(xb, y)
    assert abs(float(loss_b) - float(ref_b)) < 1e-3, (float(loss_b), float(ref_b))

    # batch=1 with multiple row tiles -> exercises the (outer parallel) tile split
    xs = jax.random.normal(k2, (1, 8, 256, 256), dtype=jnp.float32)
    ys = (jax.random.uniform(k3, (1, 8, 256, 256)) > 0.5).astype(jnp.float32)
    loss_s = jax.block_until_ready(dice_loss(xs, ys))
    ref_s = _ref_dice(xs, ys)
    assert abs(float(loss_s) - float(ref_s)) < 1e-3, (float(loss_s), float(ref_s))

    print("KERNEL_OK")
</pallas_src>

<mosaic_0001>
module attributes {stable_mosaic.version = 11 : i64} {
  func.func @kernel(%arg0: i32, %arg1: i32, %arg2: i32, %arg3: memref<2xi32, #tpu.memory_space<smem>>, %arg4: memref<1x8x128xf32, #tpu.memory_space<vmem>>, %arg5: memref<1x8x128xf32, #tpu.memory_space<vmem>>, %arg6: memref<1x1x2x8x128xf32, #tpu.memory_space<vmem>>, %arg7: memref<8x128xf32, #tpu.memory_space<vmem>>, %arg8: memref<8x128xf32, #tpu.memory_space<vmem>>) attributes {dimension_semantics = [#tpu.dimension_semantics<parallel>, #tpu.dimension_semantics<parallel>, #tpu.dimension_semantics<arbitrary>], iteration_bounds = array<i64: 2, 1, 1>, scalar_prefetch = 1 : i64, scratch_operands = 2 : i64, tpu.core_type = #tpu.core_type<tc>, window_params = [{transform_indices = @transform_0, window_bounds = array<i64: 1, 8, 128>}, {transform_indices = @transform_1, window_bounds = array<i64: 1, 8, 128>}, {transform_indices = @transform_2, window_bounds = array<i64: 1, 1, 2, 8, 128>}]} {
    %c0_i32 = arith.constant 0 : i32
    %0 = arith.cmpi eq, %arg2, %c0_i32 : i32
    %1 = arith.extui %0 : i1 to i32
    %c0_i32_0 = arith.constant 0 : i32
    %2 = arith.cmpi ne, %1, %c0_i32_0 : i32
    scf.if %2 {
      %cst = arith.constant 0.000000e+00 : f32
      %11 = vector.broadcast %cst : f32 to vector<8x128xf32>
      %c0 = arith.constant 0 : index
      %c0_5 = arith.constant 0 : index
      %12 = vector.load %arg7[%c0, %c0_5] : memref<8x128xf32, #tpu.memory_space<vmem>>, vector<8x128xf32>
      tpu.vector_store %arg7[%c0, %c0_5], %11 {strides = array<i32>} : memref<8x128xf32, #tpu.memory_space<vmem>>, vector<8x128xf32>,
      %cst_6 = arith.constant 0.000000e+00 : f32
      %13 = vector.broadcast %cst_6 : f32 to vector<8x128xf32>
      %c0_7 = arith.constant 0 : index
      %c0_8 = arith.constant 0 : index
      %14 = vector.load %arg8[%c0_7, %c0_8] : memref<8x128xf32, #tpu.memory_space<vmem>>, vector<8x128xf32>
      tpu.vector_store %arg8[%c0_7, %c0_8], %13 {strides = array<i32>} : memref<8x128xf32, #tpu.memory_space<vmem>>, vector<8x128xf32>,
    } else {
    }
    %3 = arith.index_cast %arg0 : i32 to index
    %4 = memref.load %arg3[%3] : memref<2xi32, #tpu.memory_space<smem>>
    %c0_i32_1 = arith.constant 0 : i32
    %5 = arith.cmpi sgt, %4, %c0_i32_1 : i32
    %6 = arith.extui %5 : i1 to i32
    %c0_i32_2 = arith.constant 0 : i32
    %7 = arith.cmpi ne, %6, %c0_i32_2 : i32
    scf.if %7 {
      %c0 = arith.constant 0 : index
      %c0_5 = arith.constant 0 : index
      %c0_6 = arith.constant 0 : index
      %11 = vector.load %arg4[%c0, %c0_5, %c0_6] : memref<1x8x128xf32, #tpu.memory_space<vmem>>, vector<1x8x128xf32>
      %12 = vector.shape_cast %11 : vector<1x8x128xf32> to vector<8x128xf32>
      %13 = arith.negf %12 : vector<8x128xf32>
      %14 = math.exp %13 : vector<8x128xf32>
      %cst = arith.constant 1.000000e+00 : f32
      %15 = vector.broadcast %cst : f32 to vector<8x128xf32>
      %16 = arith.addf %15, %14 : vector<8x128xf32>
      %17 = arith.divf %15, %16 : vector<8x128xf32>
      %c0_7 = arith.constant 0 : index
      %c0_8 = arith.constant 0 : index
      %c0_9 = arith.constant 0 : index
      %18 = vector.load %arg5[%c0_7, %c0_8, %c0_9] : memref<1x8x128xf32, #tpu.memory_space<vmem>>, vector<1x8x128xf32>
      %19 = vector.shape_cast %18 : vector<1x8x128xf32> to vector<8x128xf32>
      %c0_10 = arith.constant 0 : index
      %c0_11 = arith.constant 0 : index
      %20 = vector.load %arg7[%c0_10, %c0_11] : memref<8x128xf32, #tpu.memory_space<vmem>>, vector<8x128xf32>
      %21 = arith.mulf %17, %19 : vector<8x128xf32>
      %22 = vector.shape_cast %21 : vector<8x128xf32> to vector<1x8x128xf32>
      %cst_12 = arith.constant dense<0.000000e+00> : vector<8x128xf32>
      %23 = vector.multi_reduction <add>, %22, %cst_12 [0] : vector<1x8x128xf32> to vector<8x128xf32>
      %24 = arith.addf %20, %23 : vector<8x128xf32>
      %c0_13 = arith.constant 0 : index
      %c0_14 = arith.constant 0 : index
      %25 = vector.load %arg7[%c0_13, %c0_14] : memref<8x128xf32, #tpu.memory_space<vmem>>, vector<8x128xf32>
      tpu.vector_store %arg7[%c0_13, %c0_14], %24 {strides = array<i32>} : memref<8x128xf32, #tpu.memory_space<vmem>>, vector<8x128xf32>,
      %c0_15 = arith.constant 0 : index
      %c0_16 = arith.constant 0 : index
      %26 = vector.load %arg8[%c0_15, %c0_16] : memref<8x128xf32, #tpu.memory_space<vmem>>, vector<8x128xf32>
      %27 = arith.addf %17, %19 : vector<8x128xf32>
      %28 = vector.shape_cast %27 : vector<8x128xf32> to vector<1x8x128xf32>
      %cst_17 = arith.constant dense<0.000000e+00> : vector<8x128xf32>
      %29 = vector.multi_reduction <add>, %28, %cst_17 [0] : vector<1x8x128xf32> to vector<8x128xf32>
      %30 = arith.addf %26, %29 : vector<8x128xf32>
      %c0_18 = arith.constant 0 : index
      %c0_19 = arith.constant 0 : index
      %31 = vector.load %arg8[%c0_18, %c0_19] : memref<8x128xf32, #tpu.memory_space<vmem>>, vector<8x128xf32>
      tpu.vector_store %arg8[%c0_18, %c0_19], %30 {strides = array<i32>} : memref<8x128xf32, #tpu.memory_space<vmem>>, vector<8x128xf32>,
    } else {
    }
    %c0_i32_3 = arith.constant 0 : i32
    %8 = arith.cmpi eq, %arg2, %c0_i32_3 : i32
    %9 = arith.extui %8 : i1 to i32
    %c0_i32_4 = arith.constant 0 : i32
    %10 = arith.cmpi ne, %9, %c0_i32_4 : i32
    scf.if %10 {
      %c0 = arith.constant 0 : index
      %c0_5 = arith.constant 0 : index
      %11 = vector.load %arg7[%c0, %c0_5] : memref<8x128xf32, #tpu.memory_space<vmem>>, vector<8x128xf32>
      %c0_6 = arith.constant 0 : index
      %c0_7 = arith.constant 0 : index
      %c0_8 = arith.constant 0 : index
      %c0_9 = arith.constant 0 : index
      %c0_10 = arith.constant 0 : index
      %12 = vector.load %arg6[%c0_6, %c0_7, %c0_8, %c0_9, %c0_10] : memref<1x1x2x8x128xf32, #tpu.memory_space<vmem>>, vector<1x1x1x8x128xf32>
      %13 = vector.shape_cast %12 : vector<1x1x1x8x128xf32> to vector<8x128xf32>
      %14 = vector.shape_cast %11 : vector<8x128xf32> to vector<1x1x1x8x128xf32>
      tpu.vector_store %arg6[%c0_6, %c0_7, %c0_8, %c0_9, %c0_10], %14 {strides = array<i32>} : memref<1x1x2x8x128xf32, #tpu.memory_space<vmem>>, vector<1x1x1x8x128xf32>,
      %c0_11 = arith.constant 0 : index
      %c0_12 = arith.constant 0 : index
      %15 = vector.load %arg8[%c0_11, %c0_12] : memref<8x128xf32, #tpu.memory_space<vmem>>, vector<8x128xf32>
      %c0_13 = arith.constant 0 : index
      %c0_14 = arith.constant 0 : index
      %c1 = arith.constant 1 : index
      %c0_15 = arith.constant 0 : index
      %c0_16 = arith.constant 0 : index
      %16 = vector.load %arg6[%c0_13, %c0_14, %c1, %c0_15, %c0_16] : memref<1x1x2x8x128xf32, #tpu.memory_space<vmem>>, vector<1x1x1x8x128xf32>
      %17 = vector.shape_cast %16 : vector<1x1x1x8x128xf32> to vector<8x128xf32>
      %18 = vector.shape_cast %15 : vector<8x128xf32> to vector<1x1x1x8x128xf32>
      tpu.vector_store %arg6[%c0_13, %c0_14, %c1, %c0_15, %c0_16], %18 {strides = array<i32>} : memref<1x1x2x8x128xf32, #tpu.memory_space<vmem>>, vector<1x1x1x8x128xf32>,
    } else {
    }
    return
  }
  func.func @transform_0(%arg0: i32, %arg1: i32, %arg2: i32, %arg3: memref<2xi32, #tpu.memory_space<smem>>) -> (i32, i32, i32) {
    %c1_i32 = arith.constant 1 : i32
    %0 = arith.muli %arg1, %c1_i32 : i32
    %1 = arith.addi %0, %arg2 : i32
    %c0_i32 = arith.constant 0 : i32
    %2 = arith.minsi %1, %c0_i32 : i32
    %c0_i32_0 = arith.constant 0 : i32
    %c0_i32_1 = arith.constant 0 : i32
    return %arg0, %2, %c0_i32_0 : i32, i32, i32
  }
  func.func @transform_1(%arg0: i32, %arg1: i32, %arg2: i32, %arg3: memref<2xi32, #tpu.memory_space<smem>>) -> (i32, i32, i32) {
    %c1_i32 = arith.constant 1 : i32
    %0 = arith.muli %arg1, %c1_i32 : i32
    %1 = arith.addi %0, %arg2 : i32
    %c0_i32 = arith.constant 0 : i32
    %2 = arith.minsi %1, %c0_i32 : i32
    %c0_i32_0 = arith.constant 0 : i32
    %c0_i32_1 = arith.constant 0 : i32
    return %arg0, %2, %c0_i32_0 : i32, i32, i32
  }
  func.func @transform_2(%arg0: i32, %arg1: i32, %arg2: i32, %arg3: memref<2xi32, #tpu.memory_space<smem>>) -> (i32, i32, i32, i32, i32) {
    %c0_i32 = arith.constant 0 : i32
    %c0_i32_0 = arith.constant 0 : i32
    %c0_i32_1 = arith.constant 0 : i32
    %c0_i32_2 = arith.constant 0 : i32
    return %arg0, %arg1, %c0_i32, %c0_i32_0, %c0_i32_1 : i32, i32, i32, i32, i32
  }
}

</mosaic_0001>

<llo_original>
// kernel: tpu_custom_call.1
$region0: #{tpu_custom_call.1}
  #allocation0 [shape = 'u32[]', space=smem, size = 0x4, offset = 0x4, fixed_abs, tag = 'smem constant byte address 0x4 - core index']
  #allocation1 [shape = 'u32[72,128]{1,0:T(1,128)}', space=vmem, size = 0x9000, scoped, tag = 'internal scratch']
  #allocation2 [shape = 'f32[8,128]{1,0:T(8,128)}', space=vmem, size = 0x1000, scoped, tag = 'scratch operand']
  #allocation3 [shape = 'f32[8,128]{1,0:T(8,128)}', space=vmem, size = 0x1000, scoped, tag = 'scratch operand']
  #allocation4 [shape = 's32[1]{0}', space=sflag, size = 0x4, scoped, tag = 'scoped memory for tpu_custom_call.1']
  #allocation5 [shape = 'u8[512]{0}', space=smem, size = 0x200, scoped, tag = 'prefetched SMEM operand 0']
  %s0 = inlined_call_operand.hbm [shape: s32[2], index: 0, kind: input, shape index: {}]
  %s1 = inlined_call_operand.hbm [shape: f32[2,8,128], index: 1, kind: input, shape index: {}]
  %s2 = inlined_call_operand.hbm [shape: f32[2,8,128], index: 2, kind: input, shape index: {}]
  %s3 = inlined_call_operand.hbm [shape: f32[2,1,2,8,128], index: 3, kind: output, shape index: {}]
  %s4 = sld [smem:[#allocation0]]
  $region61: #{tpu_custom_call.1} parent=0
    _
  %s6 = ssub.s32 1, %s4
  %s7 = scalar_select 0, %s6, %s4
  %s9 = sshll.u32 %s0, 4
  %s10 = int_to_ptr.hbm [resolvable:$true] %s9
  %12 = dma.hbm_to_smem %s10, 16, [#allocation5], [#allocation4]
  %14 = dma.done [#allocation4], 16
  %15 = sfence
  $region1: #{tpu_custom_call.1} parent=0
    #allocation6 [shape = 'u8[8192]{0}', space=vmem, size = 0x2000, scoped, tag = 'input window, operand 1']
    #allocation7 [shape = 's32[2]{0}', space=sflag, size = 0x8, scoped, tag = 'scoped memory for tpu_custom_call.1']
    #allocation8 [shape = 's32[2]{0}', space=sflag, size = 0x8, scoped, tag = 'scoped memory for tpu_custom_call.1']
    #allocation9 [shape = 'u8[8192]{0}', space=vmem, size = 0x2000, scoped, tag = 'input window, operand 2']
    #allocation10 [shape = 's32[2]{0}', space=sflag, size = 0x8, scoped, tag = 'scoped memory for tpu_custom_call.1']
    #allocation11 [shape = 'u8[16384]{0}', space=vmem, size = 0x4000, scoped, tag = 'output window, operand 0']
    %16 = vsyncpa [#allocation7], 0
    %s17 = scalar_lea.sflag [#allocation7], 1
    %18 = vsyncpa %s17, 0
    %19 = vsyncpa [#allocation10], 0
    %s20 = scalar_lea.sflag [#allocation10], 1
    %21 = vsyncpa %s20, 0
    %22 = vsyncpa [#allocation8], 0
    %s23 = scalar_lea.sflag [#allocation8], 1
    %24 = vsyncpa %s23, 0
    loop: start=0, step=1, limit=4
    $region2: #{tpu_custom_call.1} parent=1 // loop_pre_header
      _
    $region3: #{tpu_custom_call.1} parent=1 // loop_header
      %s26 = sphi 0, %s30
      %p27 = scmp.ge.s32.totalorder %s26, 4
      %s33 = sphi 0, %s52
      %s34 = sphi 0, %s48
      %s35 = sphi 0, %s44
      %s36 = sphi 0, %s33
      %s37 = sphi 0, %s34
      %s38 = sphi 0, %s35
      %s39 = sphi 0, %s36
      %s40 = sphi 0, %s37
      %s41 = sphi 0, %s38
      %s63 = sphi 0, %s65
      %s66 = sphi 0, %s63
      %s67 = sphi 0, %s66
      %s83 = sphi 0, %s67
      %s97 = sphi 0, %s99
      %s100 = sphi 0, %s97
      %s101 = sphi 0, %s100
      %s117 = sphi 0, %s101
      %s125 = sphi 0, %s127
      %s128 = sphi 0, %s125
      %s129 = sphi 0, %s128
      %s145 = sphi 0, %s129
    $region4: #{tpu_custom_call.1} parent=1 // loop_header_branch
      %29 = sbr.rel (%p27) target = $region8
    $region5: #{tpu_custom_call.1} parent=1 // loop_body
      %s31 = ssub.s32 %s26, 1
      %s32 = ssub.s32 %s26, 2
      %s42 = sadd.s32 1, %s35
      %p43 = scmp.ge.s32.totalorder %s42, 1
      %s44 = scalar_select %p43, 0, %s42
      %s45 = sadd.s32 1, %s34
      %s46 = scalar_select %p43, %s45, %s34
      %p47 = scmp.ge.s32.totalorder %s46, 1
      %s48 = scalar_select %p47, 0, %s46
      %s49 = sadd.s32 1, %s33
      %s50 = scalar_select %p47, %s49, %s33
      %p51 = scmp.ge.s32.totalorder %s50, 2
      %s52 = scalar_select %p51, 0, %s50
      %s53 = sadd.s32 %s34, %s35
      %p54 = scmp.lt.s32.totalorder %s53, 0
      %s55 = scalar_select %p54, %s53, 0
      %s56 = sadd.s32 %s48, %s44
      %p57 = scmp.lt.s32.totalorder %s56, 0
      %s58 = scalar_select %p57, %s56, 0
      %s59 = ssub.s32 %s33, %s52
      %s60 = ssub.s32 %s55, %s58
      %s61 = sor.u32 %s59, %s60
      %p62 = scmp.eq.s32.totalorder %s61, 0
      %s64 = sadd.s32 %s63, 1
      %s65 = scalar_select %p62, %s63, %s64
      %p68 = pneg %p62
      %p69 = scmp.eq.s32.totalorder %s26, 1
      %p70 = por %p68, %p69
      %p71 = scmp.ne.s32.totalorder %s63, %s66
      %p72 = scmp.eq.s32.totalorder %s26, 0
      %p73 = por %p71, %p72
      %p74 = scmp.ne.s32.totalorder %s63, %s66
      %p75 = scmp.eq.s32.totalorder %s31, 1
      %p76 = por %p74, %p75
      %p77 = scmp.ne.s32.totalorder %s66, %s67
      %p78 = scmp.eq.s32.totalorder %s31, 0
      %p79 = por %p77, %p78
      %p80 = scmp.ne.s32.totalorder %s66, %s67
      %p81 = scmp.eq.s32.totalorder %s32, 1
      %p82 = por %p80, %p81
      %p84 = scmp.ne.s32.totalorder %s67, %s83
      %p85 = scmp.eq.s32.totalorder %s32, 0
      %p86 = por %p84, %p85
      %s87 = sadd.s32 %s34, %s35
      %p88 = scmp.lt.s32.totalorder %s87, 0
      %s89 = scalar_select %p88, %s87, 0
      %s90 = sadd.s32 %s48, %s44
      %p91 = scmp.lt.s32.totalorder %s90, 0
      %s92 = scalar_select %p91, %s90, 0
      %s93 = ssub.s32 %s33, %s52
      %s94 = ssub.s32 %s89, %s92
      %s95 = sor.u32 %s93, %s94
      %p96 = scmp.eq.s32.totalorder %s95, 0
      %s98 = sadd.s32 %s97, 1
      %s99 = scalar_select %p96, %s97, %s98
      %p102 = pneg %p96
      %p103 = scmp.eq.s32.totalorder %s26, 1
      %p104 = por %p102, %p103
      %p105 = scmp.ne.s32.totalorder %s97, %s100
      %p106 = scmp.eq.s32.totalorder %s26, 0
      %p107 = por %p105, %p106
      %p108 = scmp.ne.s32.totalorder %s97, %s100
      %p109 = scmp.eq.s32.totalorder %s31, 1
      %p110 = por %p108, %p109
      %p111 = scmp.ne.s32.totalorder %s100, %s101
      %p112 = scmp.eq.s32.totalorder %s31, 0
      %p113 = por %p111, %p112
      %p114 = scmp.ne.s32.totalorder %s100, %s101
      %p115 = scmp.eq.s32.totalorder %s32, 1
      %p116 = por %p114, %p115
      %p118 = scmp.ne.s32.totalorder %s101, %s117
      %p119 = scmp.eq.s32.totalorder %s32, 0
      %p120 = por %p118, %p119
      %s121 = ssub.s32 %s33, %s52
      %s122 = ssub.s32 %s34, %s48
      %s123 = sor.u32 %s121, %s122
      %p124 = scmp.eq.s32.totalorder %s123, 0
      %s126 = sadd.s32 %s125, 1
      %s127 = scalar_select %p124, %s125, %s126
      %p130 = pneg %p124
      %p131 = scmp.eq.s32.totalorder %s26, 1
      %p132 = por %p130, %p131
      %p133 = scmp.ne.s32.totalorder %s125, %s128
      %p134 = scmp.eq.s32.totalorder %s26, 0
      %p135 = por %p133, %p134
      %p136 = scmp.ne.s32.totalorder %s125, %s128
      %p137 = scmp.eq.s32.totalorder %s31, 1
      %p138 = por %p136, %p137
      %p139 = scmp.ne.s32.totalorder %s128, %s129
      %p140 = scmp.eq.s32.totalorder %s31, 0
      %p141 = por %p139, %p140
      %p142 = scmp.ne.s32.totalorder %s128, %s129
      %p143 = scmp.eq.s32.totalorder %s32, 1
      %p144 = por %p142, %p143
      %p146 = scmp.ne.s32.totalorder %s129, %s145
      %p147 = scmp.eq.s32.totalorder %s32, 0
      %p148 = por %p146, %p147
      %p149 = scmp.le.s32.totalorder 1, %s26
      %p150 = scmp.lt.s32.totalorder %s26, 3
      %p151 = pnand %p149, %p150
      %p152 = pneg %p151
      // Predicated region
      $region9: #{tpu_custom_call.1} parent=5 // pred_check
        _
      $region10: #{tpu_custom_call.1} parent=5 // pred_check_branch
        %154 = sbr.rel (%p151) target = $region12
      $region11: #{tpu_custom_call.1} parent=5 // pred_region
        %s155 = ssub.s32 %s26, 1
      $region12: #{tpu_custom_call.1} parent=5 // pred_fallthru
        _
      %p156 = scmp.lt.s32.totalorder %s26, 2
      // Predicated region
      $region13: #{tpu_custom_call.1} parent=5 // pred_check
        %p157 = pneg %p156
      $region14: #{tpu_custom_call.1} parent=5 // pred_check_branch
        %159 = sbr.rel (%p157) target = $region16
      $region15: #{tpu_custom_call.1} parent=5 // pred_region
        // Predicated region
        $region17: #{tpu_custom_call.1} parent=15 // pred_check
          %p160 = pneg %p73
        $region18: #{tpu_custom_call.1} parent=15 // pred_check_branch
          %162 = sbr.rel (%p160) target = $region20
        $region19: #{tpu_custom_call.1} parent=15 // pred_region
          %s163 = sand.u32 %s63, 1
          %s164 = scalar_lea.sflag [#allocation7], %s163
          %s165 = sand.u32 %s63, 1
          %s166 = smul.addr %s165, 8
          %s167 = scalar_lea.vmem [#allocation6], %s166
          %s168 = sadd.s32 %s34, %s35
          %p169 = scmp.lt.s32.totalorder %s168, 0
          %s170 = scalar_select %p169, %s168, 0
          %172 = vsyncadd %s164, 0
          %s173 = sadd.s32 %s170, %s33
          %s174 = smul.addr %s173, 8
          %s175 = scalar_lea.hbm %s1, %s174
          %s177 = sshll.u32 %s175, 4
          %s178 = int_to_ptr.hbm [resolvable:$true] %s177
          %s179 = sshll.u32 %s167, 4
          %s180 = int_to_ptr.vmem [resolvable:$true] %s179
          %182 = dma.hbm_to_vmem [thread:$0]  %s178, 128, %s180, %s164
        $region20: #{tpu_custom_call.1} parent=15 // pred_fallthru
          _
        // Predicated region
        $region21: #{tpu_custom_call.1} parent=15 // pred_check
          %p183 = pneg %p107
        $region22: #{tpu_custom_call.1} parent=15 // pred_check_branch
          %185 = sbr.rel (%p183) target = $region24
        $region23: #{tpu_custom_call.1} parent=15 // pred_region
          %s186 = sand.u32 %s97, 1
          %s187 = scalar_lea.sflag [#allocation10], %s186
          %s188 = sand.u32 %s97, 1
          %s189 = smul.addr %s188, 8
          %s190 = scalar_lea.vmem [#allocation9], %s189
          %s191 = sadd.s32 %s34, %s35
          %p192 = scmp.lt.s32.totalorder %s191, 0
          %s193 = scalar_select %p192, %s191, 0
          %195 = vsyncadd %s187, 0
          %s196 = sadd.s32 %s193, %s33
          %s197 = smul.addr %s196, 8
          %s198 = scalar_lea.hbm %s2, %s197
          %s200 = sshll.u32 %s198, 4
          %s201 = int_to_ptr.hbm [resolvable:$true] %s200
          %s202 = sshll.u32 %s190, 4
          %s203 = int_to_ptr.vmem [resolvable:$true] %s202
          %205 = dma.hbm_to_vmem [thread:$0]  %s201, 128, %s203, %s187
        $region24: #{tpu_custom_call.1} parent=15 // pred_fallthru
          _
      $region16: #{tpu_custom_call.1} parent=5 // pred_fallthru
        _
      %p206 = scmp.le.s32.totalorder 1, %s26
      %p207 = scmp.lt.s32.totalorder %s26, 3
      %p208 = pnand %p206, %p207
      %p209 = pneg %p208
      // Predicated region
      $region25: #{tpu_custom_call.1} parent=5 // pred_check
        _
      $region26: #{tpu_custom_call.1} parent=5 // pred_check_branch
        %211 = sbr.rel (%p208) target = $region28
      $region27: #{tpu_custom_call.1} parent=5 // pred_region
        %s212 = ssub.s32 %s26, 1
        %s213 = sand.u32 %s66, 1
        %s214 = scalar_lea.sflag [#allocation7], %s213
        %s215 = sand.u32 %s66, 1
        %s216 = smul.addr %s215, 8
        %s217 = scalar_lea.vmem [#allocation6], %s216
        // Predicated region
        $region29: #{tpu_custom_call.1} parent=27 // pred_check
          %p218 = pneg %p79
        $region30: #{tpu_custom_call.1} parent=27 // pred_check_branch
          %220 = sbr.rel (%p218) target = $region32
        $region31: #{tpu_custom_call.1} parent=27 // pred_region
          %222 = dma.done %s214, 128
        $region32: #{tpu_custom_call.1} parent=27 // pred_fallthru
          _
        %s223 = sand.u32 %s100, 1
        %s224 = scalar_lea.sflag [#allocation10], %s223
        %s225 = sand.u32 %s100, 1
        %s226 = smul.addr %s225, 8
        %s227 = scalar_lea.vmem [#allocation9], %s226
        // Predicated region
        $region33: #{tpu_custom_call.1} parent=27 // pred_check
          %p228 = pneg %p113
        $region34: #{tpu_custom_call.1} parent=27 // pred_check_branch
          %230 = sbr.rel (%p228) target = $region36
        $region35: #{tpu_custom_call.1} parent=27 // pred_region
          %232 = dma.done %s224, 128
        $region36: #{tpu_custom_call.1} parent=27 // pred_fallthru
          _
        %s233 = sand.u32 %s66, 1
        %s234 = scalar_lea.sflag [#allocation7], %s233
        %s235 = sand.u32 %s66, 1
        %s236 = smul.addr %s235, 8
        %s237 = scalar_lea.vmem [#allocation6], %s236
        %p238 = pneg %p79
        %p239 = pneg %p76
        %s240 = sand.u32 %s100, 1
        %s241 = scalar_lea.sflag [#allocation10], %s240
        %s242 = sand.u32 %s100, 1
        %s243 = smul.addr %s242, 8
        %s244 = scalar_lea.vmem [#allocation9], %s243
        %p245 = pneg %p113
        %p246 = pneg %p110
        %p247 = pneg %p141
        %p248 = pneg %p138
        %s249 = sand.u32 %s128, 1
        %s250 = scalar_lea.sflag [#allocation8], %s249
        %s251 = sand.u32 %s128, 1
        %s252 = smul.addr %s251, 16
        %s253 = scalar_lea.vmem [#allocation11], %s252
        %s254 = sadd.s32 %s37, %s38
        %p255 = scmp.lt.s32.totalorder %s254, 0
        %s256 = scalar_select %p255, %s254, 0
        %s257 = sadd.s32 %s37, %s38
        %p258 = scmp.lt.s32.totalorder %s257, 0
        %s259 = scalar_select %p258, %s257, 0
        %p260 = scmp.eq.s32.totalorder %s38, 0
        // Predicated region
        $region37: #{tpu_custom_call.1} parent=27 // pred_check
          %p261 = pneg %p260
        $region38: #{tpu_custom_call.1} parent=27 // pred_check_branch
          %263 = sbr.rel (%p261) target = $region40
        $region39: #{tpu_custom_call.1} parent=27 // pred_region
          %264 = vst [vmem:[#allocation2] sm:$0xff] 0.0
          %265 = vst [vmem:[#allocation3] sm:$0xff] 0.0
        $region40: #{tpu_custom_call.1} parent=27 // pred_fallthru
          _
        %s266 = sld [smem:[#allocation5 + %s36]]
        %p267 = scmp.gt.s32.totalorder %s266, 0
        // Predicated region
        $region41: #{tpu_custom_call.1} parent=27 // pred_check
          %p268 = pneg %p267
        $region42: #{tpu_custom_call.1} parent=27 // pred_check_branch
          %270 = sbr.rel (%p268) target = $region44
        $region43: #{tpu_custom_call.1} parent=27 // pred_region
          %v271 = vld [vmem:[%s217] sm:$0xff]
          %v272 = vxor.u32 %v271, 2147483648
          %v273 = vmul.f32 %v272, 1.442695
          %v274 = vpow.pop %v273
          %v275 = vadd.f32 %v274, 1.0
          %v276 = vrcp.pop %v275
          %v277 = vmul.f32 %v275, %v276
          %v278 = vsub.f32 1.0, %v277
          %v279 = vmul.f32 %v276, %v278
          %v280 = vadd.f32 %v276, %v279
          %vm281 = vweird.f32 %v275
          %vm282 = vweird.f32 %v276
          %vm283 = vmor %vm281, %vm282
          %v284 = vsel %vm283, %v276, %v280
          %v285 = vand.u32 2147483647, %v275
          %vm286 = vcmp.eq.f32.partialorder %v285, 8.507059e+37
          %v287 = vand.u32 %v275, 2147483648
          %v288 = vor.u32 1.1754944e-38, %v287
          %v289 = vsel %vm286, %v288, %v284
          %v290 = vmul.f32 1.0, %v289
          %v291 = vld [vmem:[%s227] sm:$0xff]
          %v292 = vld [vmem:[#allocation2] sm:$0xff]
          %v293 = vmul.f32 %v290, %v291
          %v294 = vadd.f32 %v293, 0.0
          %v295 = vadd.f32 %v292, %v294
          %296 = vst [vmem:[#allocation2] sm:$0xff] %v295
          %v297 = vld [vmem:[#allocation3] sm:$0xff]
          %v298 = vadd.f32 %v290, %v291
          %v299 = vadd.f32 %v298, 0.0
          %v300 = vadd.f32 %v297, %v299
          %301 = vst [vmem:[#allocation3] sm:$0xff] %v300
        $region44: #{tpu_custom_call.1} parent=27 // pred_fallthru
          _
        // Predicated region
        $region45: #{tpu_custom_call.1} parent=27 // pred_check
          %p302 = pneg %p260
        $region46: #{tpu_custom_call.1} parent=27 // pred_check_branch
          %304 = sbr.rel (%p302) target = $region48
        $region47: #{tpu_custom_call.1} parent=27 // pred_region
          %v305 = vld [vmem:[#allocation2] sm:$0xff]
          %306 = vst [vmem:[%s253] sm:$0xff] %v305
          %v307 = vld [vmem:[#allocation3] sm:$0xff]
          %s308 = scalar_lea.vmem %s253, 8 [#allocation11]
          %309 = vst [vmem:[%s308] sm:$0xff] %v307
        $region48: #{tpu_custom_call.1} parent=27 // pred_fallthru
          _
        %s310 = sand.u32 %s128, 1
        %s311 = scalar_lea.sflag [#allocation8], %s310
        %s312 = sand.u32 %s128, 1
        %s313 = smul.addr %s312, 16
        %s314 = scalar_lea.vmem [#allocation11], %s313
        // Predicated region
        $region49: #{tpu_custom_call.1} parent=27 // pred_check
          %p315 = pneg %p138
        $region50: #{tpu_custom_call.1} parent=27 // pred_check_branch
          %317 = sbr.rel (%p315) target = $region52
        $region51: #{tpu_custom_call.1} parent=27 // pred_region
          %319 = vsyncadd %s311, 0
          %s320 = smul.addr %s37, 2
          %s321 = smul.addr %s36, 2
          %s322 = sadd.s32 %s320, %s321
          %s323 = smul.addr %s322, 8
          %s324 = scalar_lea.hbm %s3, %s323
          %s325 = sshll.u32 %s314, 4
          %s326 = int_to_ptr.vmem [resolvable:$true] %s325
          %s327 = sshll.u32 %s324, 4
          %s328 = int_to_ptr.hbm [resolvable:$true] %s327
          %333 = dma.vmem_to_hbm [thread:$0]  %s326, 256, %s328, %s311, 128, 128, 8
        $region52: #{tpu_custom_call.1} parent=27 // pred_fallthru
          _
      $region28: #{tpu_custom_call.1} parent=5 // pred_fallthru
        _
      %p334 = scmp.le.s32.totalorder 2, %s26
      // Predicated region
      $region53: #{tpu_custom_call.1} parent=5 // pred_check
        %p335 = pneg %p334
      $region54: #{tpu_custom_call.1} parent=5 // pred_check_branch
        %337 = sbr.rel (%p335) target = $region56
      $region55: #{tpu_custom_call.1} parent=5 // pred_region
        %s338 = ssub.s32 %s26, 2
        // Predicated region
        $region57: #{tpu_custom_call.1} parent=55 // pred_check
          %p339 = pneg %p144
        $region58: #{tpu_custom_call.1} parent=55 // pred_check_branch
          %341 = sbr.rel (%p339) target = $region60
        $region59: #{tpu_custom_call.1} parent=55 // pred_region
          %s342 = sand.u32 %s129, 1
          %s343 = scalar_lea.sflag [#allocation8], %s342
          %s344 = sand.u32 %s129, 1
          %s345 = smul.addr %s344, 16
          %s346 = scalar_lea.vmem [#allocation11], %s345
          %348 = dma.done %s343, 256
        $region60: #{tpu_custom_call.1} parent=55 // pred_fallthru
          _
      $region56: #{tpu_custom_call.1} parent=5 // pred_fallthru
        _
    $region6: #{tpu_custom_call.1} parent=1 // loop_footer
      %s30 = sadd.s32 1, %s26
    $region7: #{tpu_custom_call.1} parent=1 // loop_footer_branch
      %25 = sbr.rel target = $region3
    $region8: #{tpu_custom_call.1} parent=1 // loop_exit
      _
    %349 = vsyncpa [#allocation7], 1
    %s350 = scalar_lea.sflag [#allocation7], 1
    %351 = vsyncpa %s350, 1
    %352 = vsyncpa [#allocation10], 1
    %s353 = scalar_lea.sflag [#allocation10], 1
    %354 = vsyncpa %s353, 1
    %355 = vsyncpa [#allocation8], 1
    %s356 = scalar_lea.sflag [#allocation8], 1
    %357 = vsyncpa %s356, 1

</llo_original>
